<compile_context>
chip_gen: v5e
topology: v5e:2x2
jax: 0.10.0
libtpu: 0.0.40
codegen_flags: <defaults>
</compile_context>

<pallas_src>
import functools

import jax
import jax.numpy as jnp
from jax.experimental import pallas as pl
from jax.experimental.pallas import tpu as pltpu


def cnn_extract_kernel(x_ref, w1_ref, b1_ref, w2_ref, b2_ref, o_ref, *, H, W):
    # x_ref:  (Cin, NB*H*W)  whole images, flattened & concatenated along lanes
    # w1_ref: (C1, 9*Cin)    conv1 weights, col = (ky*3+kx)*Cin + ci   (f32)
    # b1_ref: (C1, 1)
    # w2_ref: (C2, 9*C1)     conv2 weights, col = (ky*3+kx)*C1 + c1    (bf16)
    # b2_ref: (C2, 1)
    # o_ref:  (C2, NB)       per-image spatial means (transposed in wrapper)
    NBHW = x_ref.shape[1]
    HW = H * W
    NB = NBHW // HW
    Cin = x_ref.shape[0]
    C1 = w1_ref.shape[0]

    # ---- SAME-padding boundary masks, generated in-kernel (no HBM traffic) ----
    pos = jax.lax.broadcasted_iota(jnp.int32, (1, NBHW), 1)
    if (W & (W - 1)) == 0 and (HW & (HW - 1)) == 0:
        jj = pos & (W - 1)          # column within image
        q = pos & (HW - 1)          # pixel index within image
    else:
        # TODO(synk): non-power-of-two H/W relies on vector int rem lowering.
        jj = pos % W
        q = pos % HW
    not_top = q >= W                # row >= 1
    not_bot = q < (HW - W)          # row <= H-2
    not_lft = jj >= 1               # col >= 1
    not_rgt = jj <= (W - 2)         # col <= W-2
    row_ok = {-1: not_top, 0: None, 1: not_bot}
    col_ok = {-1: not_lft, 0: None, 1: not_rgt}

    masks = []
    for k in range(9):
        dy, dx = k // 3 - 1, k % 3 - 1
        conds = [c for c in (row_ok[dy], col_ok[dx]) if c is not None]
        if not conds:
            masks.append(None)                              # center tap
        else:
            c = conds[0] if len(conds) == 1 else (conds[0] & conds[1])
            masks.append(jnp.where(c, 1.0, 0.0))            # (1, NBHW) f32

    def tap(a, k):
        # Shifted + masked view of `a` for 3x3 tap k: a[:, p + dy*W + dx] with
        # out-of-image (SAME padding) positions zeroed.  Roll wraparound /
        # cross-image bleed only ever lands on masked positions.
        dy, dx = k // 3 - 1, k % 3 - 1
        s = dy * W + dx
        if s == 0:
            return a
        rolled = pltpu.roll(a, (-s) % NBHW, axis=1)         # XLU lane rotate
        return rolled * masks[k]

    x = x_ref[...]
    w1 = w1_ref[...]

    # ---- conv1 + ReLU: tiny Cin -> pure VPU broadcast FMAs (no MXU) ----
    # TODO(synk): if Cin grows beyond ~2, stack taps and use the MXU (v5e VPU
    # has no f32 FMA), mirroring the conv2 path below.
    acc1 = jnp.broadcast_to(b1_ref[...], (C1, NBHW))
    for k in range(9):
        sx = tap(x, k)                                      # (Cin, NBHW)
        for c in range(Cin):
            col = k * Cin + c
            acc1 = acc1 + w1[:, col:col + 1] * sx[c:c + 1, :]
    feat1 = jnp.maximum(acc1, 0.0)                          # (C1, NBHW) f32

    # ---- conv2 + ReLU: per-tap bf16 cast, one fused K = 9*C1 MXU matmul ----
    stack2 = jnp.concatenate(
        [tap(feat1, k).astype(jnp.bfloat16) for k in range(9)], axis=0)
    acc2 = jnp.dot(w2_ref[...], stack2,
                   preferred_element_type=jnp.float32)      # (C2, NBHW) f32
    feat2 = jnp.maximum(acc2 + b2_ref[...], 0.0)

    # ---- per-image spatial mean: lane-tile-aligned slices + lane reduces ----
    sums = [jnp.sum(feat2[:, n * HW:(n + 1) * HW], axis=1, keepdims=True)
            for n in range(NB)]
    means = (sums[0] if NB == 1 else jnp.concatenate(sums, axis=1))
    o_ref[...] = means * (1.0 / HW)                         # (C2, NB)


def cnn_extract(x_nchw, w1_oihw, b1, w2_oihw, b2, *, target_block_px=16384):
    """x_nchw: (N, Cin, H, W) f32; weights in PyTorch OIHW layout.

    Returns (N, C2) f32 = mean_{H,W}(ReLU(conv2(ReLU(conv1(x))))).
    """
    N, Cin, H, W = x_nchw.shape
    C1 = w1_oihw.shape[0]
    C2 = w2_oihw.shape[0]
    HW = H * W

    # Lane-dense layouts built once on the XLA side (cheap, one-off).
    x_flat = jnp.transpose(x_nchw, (1, 0, 2, 3)).reshape(Cin, N * HW)
    x_flat = x_flat.astype(jnp.float32)
    w1_mat = jnp.transpose(w1_oihw, (0, 2, 3, 1)).reshape(C1, 9 * Cin)
    w1_mat = w1_mat.astype(jnp.float32)
    # conv2 weights go to the MXU as bf16 operands (f32 accumulation).
    w2_mat = jnp.transpose(w2_oihw, (0, 2, 3, 1)).reshape(C2, 9 * C1)
    w2_mat = w2_mat.astype(jnp.bfloat16)
    b1c = b1.reshape(C1, 1).astype(jnp.float32)
    b2c = b2.reshape(C2, 1).astype(jnp.float32)

    # Image-block grid axis: whole images per step (keeps the roll/mask trick
    # valid), sized conservatively for v7x's smaller VMEM; "parallel" lets
    # Mosaic shard blocks over both v7x TensorCores when num_blocks > 1.
    imgs_per_block = max(1, min(N, target_block_px // HW))
    while N % imgs_per_block:
        imgs_per_block -= 1
    num_blocks = N // imgs_per_block
    nbhw = imgs_per_block * HW

    kernel = functools.partial(cnn_extract_kernel, H=H, W=W)
    out_cn = pl.pallas_call(
        kernel,
        out_shape=jax.ShapeDtypeStruct((C2, N), jnp.float32),
        grid=(num_blocks,),
        in_specs=[
            pl.BlockSpec((Cin, nbhw), lambda i: (0, i)),
            pl.BlockSpec((C1, 9 * Cin), lambda i: (0, 0)),
            pl.BlockSpec((C1, 1), lambda i: (0, 0)),
            pl.BlockSpec((C2, 9 * C1), lambda i: (0, 0)),
            pl.BlockSpec((C2, 1), lambda i: (0, 0)),
        ],
        out_specs=pl.BlockSpec((C2, imgs_per_block), lambda i: (0, i)),
        compiler_params=pltpu.CompilerParams(
            dimension_semantics=("parallel",),
            vmem_limit_bytes=32 * 1024 * 1024),
    )(x_flat, w1_mat, b1c, w2_mat, b2c)
    return out_cn.T                                         # (N, C2)


def reference_jax(x_nchw, w1_oihw, b1, w2_oihw, b2):
    """Pure-JAX reference with PyTorch-layout (OIHW) weights."""
    dn = ("NCHW", "OIHW", "NCHW")
    y = jax.lax.conv_general_dilated(
        x_nchw, w1_oihw, (1, 1), "SAME", dimension_numbers=dn,
        precision=jax.lax.Precision.HIGHEST)
    y = jax.nn.relu(y + b1.reshape(1, -1, 1, 1))
    z = jax.lax.conv_general_dilated(
        y, w2_oihw, (1, 1), "SAME", dimension_numbers=dn,
        precision=jax.lax.Precision.HIGHEST)
    z = jax.nn.relu(z + b2.reshape(1, -1, 1, 1))
    return z.mean(axis=(2, 3))


if __name__ == "__main__":
    key = jax.random.PRNGKey(0)
    N, Cin, H, W = 2, 1, 16, 16
    C1, C2 = 8, 16  # hidden=8, out_channels=16 (module defaults)

    kx, k1, kb1, k2, kb2 = jax.random.split(key, 5)
    x = jax.random.normal(kx, (N, Cin, H, W), dtype=jnp.float32)
    # Synthetic parameters in PyTorch Conv2d layout (OIHW weights, (O,) bias).
    w1 = jax.random.normal(k1, (C1, Cin, 3, 3), dtype=jnp.float32) * 0.1
    b1 = jax.random.normal(kb1, (C1,), dtype=jnp.float32) * 0.1
    w2 = jax.random.normal(k2, (C2, C1, 3, 3), dtype=jnp.float32) * 0.1
    b2 = jax.random.normal(kb2, (C2,), dtype=jnp.float32) * 0.1

    out = jax.block_until_ready(cnn_extract(x, w1, b1, w2, b2))
    ref = jax.block_until_ready(reference_jax(x, w1, b1, w2, b2))

    assert out.shape == (N, C2), out.shape
    # conv2 intentionally runs with bf16 MXU operands (f32 accumulation), so
    # allow a slightly looser (still tight) tolerance than pure f32.
    assert jnp.allclose(out, ref, atol=2e-3, rtol=2e-3), (
        "max abs err = %g" % float(jnp.max(jnp.abs(out - ref))))
    print("KERNEL_OK")
</pallas_src>

<mosaic_0001>
module attributes {stable_mosaic.version = 11 : i64} {
  func.func @cnn_extract_kernel(%arg0: i32, %arg1: memref<1x512xf32, #tpu.memory_space<vmem>>, %arg2: memref<8x9xf32, #tpu.memory_space<vmem>>, %arg3: memref<8x1xf32, #tpu.memory_space<vmem>>, %arg4: memref<16x72xbf16, #tpu.memory_space<vmem>>, %arg5: memref<16x1xf32, #tpu.memory_space<vmem>>, %arg6: memref<16x2xf32, #tpu.memory_space<vmem>>) attributes {dimension_semantics = [#tpu.dimension_semantics<parallel>], iteration_bounds = array<i64: 1>, scalar_prefetch = 0 : i64, scratch_operands = 0 : i64, tpu.core_type = #tpu.core_type<tc>, window_params = [{transform_indices = @transform_0, window_bounds = array<i64: 1, 512>}, {pipeline_mode = #tpu.pipeline_mode<synchronous>, transform_indices = @transform_1, window_bounds = array<i64: 8, 9>}, {pipeline_mode = #tpu.pipeline_mode<synchronous>, transform_indices = @transform_2, window_bounds = array<i64: 8, 1>}, {pipeline_mode = #tpu.pipeline_mode<synchronous>, transform_indices = @transform_3, window_bounds = array<i64: 16, 72>}, {pipeline_mode = #tpu.pipeline_mode<synchronous>, transform_indices = @transform_4, window_bounds = array<i64: 16, 1>}, {transform_indices = @transform_5, window_bounds = array<i64: 16, 2>}]} {
    %0 = tpu.iota {dimensions = array<i32: 1>} : vector<1x512xi32>
    %c15_i32 = arith.constant 15 : i32
    %1 = vector.broadcast %c15_i32 : i32 to vector<1x512xi32>
    %2 = arith.andi %0, %1 : vector<1x512xi32>
    %c255_i32 = arith.constant 255 : i32
    %3 = vector.broadcast %c255_i32 : i32 to vector<1x512xi32>
    %4 = arith.andi %0, %3 : vector<1x512xi32>
    %c16_i32 = arith.constant 16 : i32
    %5 = vector.broadcast %c16_i32 : i32 to vector<1x512xi32>
    %6 = arith.cmpi sge, %4, %5 : vector<1x512xi32>
    %c240_i32 = arith.constant 240 : i32
    %7 = vector.broadcast %c240_i32 : i32 to vector<1x512xi32>
    %8 = arith.cmpi slt, %4, %7 : vector<1x512xi32>
    %c1_i32 = arith.constant 1 : i32
    %9 = vector.broadcast %c1_i32 : i32 to vector<1x512xi32>
    %10 = arith.cmpi sge, %2, %9 : vector<1x512xi32>
    %c14_i32 = arith.constant 14 : i32
    %11 = vector.broadcast %c14_i32 : i32 to vector<1x512xi32>
    %12 = arith.cmpi sle, %2, %11 : vector<1x512xi32>
    %13 = arith.andi %6, %10 : vector<1x512xi1>
    %cst = arith.constant 1.000000e+00 : f32
    %cst_0 = arith.constant 0.000000e+00 : f32
    %14 = vector.broadcast %cst : f32 to vector<1x512xf32>
    %15 = vector.broadcast %cst_0 : f32 to vector<1x512xf32>
    %16 = arith.select %13, %14, %15 : vector<1x512xi1>, vector<1x512xf32>
    %cst_1 = arith.constant 1.000000e+00 : f32
    %cst_2 = arith.constant 0.000000e+00 : f32
    %17 = vector.broadcast %cst_1 : f32 to vector<1x512xf32>
    %18 = vector.broadcast %cst_2 : f32 to vector<1x512xf32>
    %19 = arith.select %6, %17, %18 : vector<1x512xi1>, vector<1x512xf32>
    %20 = arith.andi %6, %12 : vector<1x512xi1>
    %cst_3 = arith.constant 1.000000e+00 : f32
    %cst_4 = arith.constant 0.000000e+00 : f32
    %21 = vector.broadcast %cst_3 : f32 to vector<1x512xf32>
    %22 = vector.broadcast %cst_4 : f32 to vector<1x512xf32>
    %23 = arith.select %20, %21, %22 : vector<1x512xi1>, vector<1x512xf32>
    %cst_5 = arith.constant 1.000000e+00 : f32
    %cst_6 = arith.constant 0.000000e+00 : f32
    %24 = vector.broadcast %cst_5 : f32 to vector<1x512xf32>
    %25 = vector.broadcast %cst_6 : f32 to vector<1x512xf32>
    %26 = arith.select %10, %24, %25 : vector<1x512xi1>, vector<1x512xf32>
    %cst_7 = arith.constant 1.000000e+00 : f32
    %cst_8 = arith.constant 0.000000e+00 : f32
    %27 = vector.broadcast %cst_7 : f32 to vector<1x512xf32>
    %28 = vector.broadcast %cst_8 : f32 to vector<1x512xf32>
    %29 = arith.select %12, %27, %28 : vector<1x512xi1>, vector<1x512xf32>
    %30 = arith.andi %8, %10 : vector<1x512xi1>
    %cst_9 = arith.constant 1.000000e+00 : f32
    %cst_10 = arith.constant 0.000000e+00 : f32
    %31 = vector.broadcast %cst_9 : f32 to vector<1x512xf32>
    %32 = vector.broadcast %cst_10 : f32 to vector<1x512xf32>
    %33 = arith.select %30, %31, %32 : vector<1x512xi1>, vector<1x512xf32>
    %cst_11 = arith.constant 1.000000e+00 : f32
    %cst_12 = arith.constant 0.000000e+00 : f32
    %34 = vector.broadcast %cst_11 : f32 to vector<1x512xf32>
    %35 = vector.broadcast %cst_12 : f32 to vector<1x512xf32>
    %36 = arith.select %8, %34, %35 : vector<1x512xi1>, vector<1x512xf32>
    %37 = arith.andi %8, %12 : vector<1x512xi1>
    %cst_13 = arith.constant 1.000000e+00 : f32
    %cst_14 = arith.constant 0.000000e+00 : f32
    %38 = vector.broadcast %cst_13 : f32 to vector<1x512xf32>
    %39 = vector.broadcast %cst_14 : f32 to vector<1x512xf32>
    %40 = arith.select %37, %38, %39 : vector<1x512xi1>, vector<1x512xf32>
    %c0 = arith.constant 0 : index
    %c0_15 = arith.constant 0 : index
    %41 = vector.load %arg1[%c0, %c0_15] : memref<1x512xf32, #tpu.memory_space<vmem>>, vector<1x512xf32>
    %c0_16 = arith.constant 0 : index
    %c0_17 = arith.constant 0 : index
    %42 = vector.load %arg2[%c0_16, %c0_17] : memref<8x9xf32, #tpu.memory_space<vmem>>, vector<8x9xf32>
    %c0_18 = arith.constant 0 : index
    %c0_19 = arith.constant 0 : index
    %43 = vector.load %arg3[%c0_18, %c0_19] : memref<8x1xf32, #tpu.memory_space<vmem>>, vector<8x1xf32>
    %44 = vector.shape_cast %43 : vector<8x1xf32> to vector<8x1xf32>
    %45 = vector.broadcast %44 : vector<8x1xf32> to vector<8x512xf32>
    %c17_i32 = arith.constant 17 : i32
    %46 = tpu.dynamic_rotate %41 by %c17_i32 dim 1 : vector<1x512xf32>, i32 -> vector<1x512xf32>
    %47 = arith.mulf %46, %16 : vector<1x512xf32>
    %48 = vector.extract_strided_slice %42 {offsets = [0, 0], sizes = [8, 1], strides = [1, 1]} : vector<8x9xf32> to vector<8x1xf32>
    %49 = vector.broadcast %48 : vector<8x1xf32> to vector<8x512xf32>
    %50 = vector.broadcast %47 : vector<1x512xf32> to vector<8x512xf32>
    %51 = arith.mulf %49, %50 : vector<8x512xf32>
    %52 = arith.addf %45, %51 : vector<8x512xf32>
    %c16_i32_20 = arith.constant 16 : i32
    %53 = tpu.dynamic_rotate %41 by %c16_i32_20 dim 1 : vector<1x512xf32>, i32 -> vector<1x512xf32>
    %54 = arith.mulf %53, %19 : vector<1x512xf32>
    %55 = vector.extract_strided_slice %42 {offsets = [0, 1], sizes = [8, 1], strides = [1, 1]} : vector<8x9xf32> to vector<8x1xf32>
    %56 = vector.broadcast %55 : vector<8x1xf32> to vector<8x512xf32>
    %57 = vector.broadcast %54 : vector<1x512xf32> to vector<8x512xf32>
    %58 = arith.mulf %56, %57 : vector<8x512xf32>
    %59 = arith.addf %52, %58 : vector<8x512xf32>
    %c15_i32_21 = arith.constant 15 : i32
    %60 = tpu.dynamic_rotate %41 by %c15_i32_21 dim 1 : vector<1x512xf32>, i32 -> vector<1x512xf32>
    %61 = arith.mulf %60, %23 : vector<1x512xf32>
    %62 = vector.extract_strided_slice %42 {offsets = [0, 2], sizes = [8, 1], strides = [1, 1]} : vector<8x9xf32> to vector<8x1xf32>
    %63 = vector.broadcast %62 : vector<8x1xf32> to vector<8x512xf32>
    %64 = vector.broadcast %61 : vector<1x512xf32> to vector<8x512xf32>
    %65 = arith.mulf %63, %64 : vector<8x512xf32>
    %66 = arith.addf %59, %65 : vector<8x512xf32>
    %c1_i32_22 = arith.constant 1 : i32
    %67 = tpu.dynamic_rotate %41 by %c1_i32_22 dim 1 : vector<1x512xf32>, i32 -> vector<1x512xf32>
    %68 = arith.mulf %67, %26 : vector<1x512xf32>
    %69 = vector.extract_strided_slice %42 {offsets = [0, 3], sizes = [8, 1], strides = [1, 1]} : vector<8x9xf32> to vector<8x1xf32>
    %70 = vector.broadcast %69 : vector<8x1xf32> to vector<8x512xf32>
    %71 = vector.broadcast %68 : vector<1x512xf32> to vector<8x512xf32>
    %72 = arith.mulf %70, %71 : vector<8x512xf32>
    %73 = arith.addf %66, %72 : vector<8x512xf32>
    %74 = vector.extract_strided_slice %42 {offsets = [0, 4], sizes = [8, 1], strides = [1, 1]} : vector<8x9xf32> to vector<8x1xf32>
    %75 = vector.broadcast %74 : vector<8x1xf32> to vector<8x512xf32>
    %76 = vector.broadcast %41 : vector<1x512xf32> to vector<8x512xf32>
    %77 = arith.mulf %75, %76 : vector<8x512xf32>
    %78 = arith.addf %73, %77 : vector<8x512xf32>
    %c511_i32 = arith.constant 511 : i32
    %79 = tpu.dynamic_rotate %41 by %c511_i32 dim 1 : vector<1x512xf32>, i32 -> vector<1x512xf32>
    %80 = arith.mulf %79, %29 : vector<1x512xf32>
    %81 = vector.extract_strided_slice %42 {offsets = [0, 5], sizes = [8, 1], strides = [1, 1]} : vector<8x9xf32> to vector<8x1xf32>
    %82 = vector.broadcast %81 : vector<8x1xf32> to vector<8x512xf32>
    %83 = vector.broadcast %80 : vector<1x512xf32> to vector<8x512xf32>
    %84 = arith.mulf %82, %83 : vector<8x512xf32>
    %85 = arith.addf %78, %84 : vector<8x512xf32>
    %c497_i32 = arith.constant 497 : i32
    %86 = tpu.dynamic_rotate %41 by %c497_i32 dim 1 : vector<1x512xf32>, i32 -> vector<1x512xf32>
    %87 = arith.mulf %86, %33 : vector<1x512xf32>
    %88 = vector.extract_strided_slice %42 {offsets = [0, 6], sizes = [8, 1], strides = [1, 1]} : vector<8x9xf32> to vector<8x1xf32>
    %89 = vector.broadcast %88 : vector<8x1xf32> to vector<8x512xf32>
    %90 = vector.broadcast %87 : vector<1x512xf32> to vector<8x512xf32>
    %91 = arith.mulf %89, %90 : vector<8x512xf32>
    %92 = arith.addf %85, %91 : vector<8x512xf32>
    %c496_i32 = arith.constant 496 : i32
    %93 = tpu.dynamic_rotate %41 by %c496_i32 dim 1 : vector<1x512xf32>, i32 -> vector<1x512xf32>
    %94 = arith.mulf %93, %36 : vector<1x512xf32>
    %95 = vector.extract_strided_slice %42 {offsets = [0, 7], sizes = [8, 1], strides = [1, 1]} : vector<8x9xf32> to vector<8x1xf32>
    %96 = vector.broadcast %95 : vector<8x1xf32> to vector<8x512xf32>
    %97 = vector.broadcast %94 : vector<1x512xf32> to vector<8x512xf32>
    %98 = arith.mulf %96, %97 : vector<8x512xf32>
    %99 = arith.addf %92, %98 : vector<8x512xf32>
    %c495_i32 = arith.constant 495 : i32
    %100 = tpu.dynamic_rotate %41 by %c495_i32 dim 1 : vector<1x512xf32>, i32 -> vector<1x512xf32>
    %101 = arith.mulf %100, %40 : vector<1x512xf32>
    %102 = vector.extract_strided_slice %42 {offsets = [0, 8], sizes = [8, 1], strides = [1, 1]} : vector<8x9xf32> to vector<8x1xf32>
    %103 = vector.broadcast %102 : vector<8x1xf32> to vector<8x512xf32>
    %104 = vector.broadcast %101 : vector<1x512xf32> to vector<8x512xf32>
    %105 = arith.mulf %103, %104 : vector<8x512xf32>
    %106 = arith.addf %99, %105 : vector<8x512xf32>
    %cst_23 = arith.constant 0.000000e+00 : f32
    %107 = vector.broadcast %cst_23 : f32 to vector<8x512xf32>
    %108 = arith.maximumf %106, %107 : vector<8x512xf32>
    %c17_i32_24 = arith.constant 17 : i32
    %109 = tpu.dynamic_rotate %108 by %c17_i32_24 dim 1 : vector<8x512xf32>, i32 -> vector<8x512xf32>
    %110 = vector.broadcast %16 : vector<1x512xf32> to vector<8x512xf32>
    %111 = arith.mulf %109, %110 : vector<8x512xf32>
    %112 = arith.truncf %111 : vector<8x512xf32> to vector<8x512xbf16>
    %c16_i32_25 = arith.constant 16 : i32
    %113 = tpu.dynamic_rotate %108 by %c16_i32_25 dim 1 : vector<8x512xf32>, i32 -> vector<8x512xf32>
    %114 = vector.broadcast %19 : vector<1x512xf32> to vector<8x512xf32>
    %115 = arith.mulf %113, %114 : vector<8x512xf32>
    %116 = arith.truncf %115 : vector<8x512xf32> to vector<8x512xbf16>
    %c15_i32_26 = arith.constant 15 : i32
    %117 = tpu.dynamic_rotate %108 by %c15_i32_26 dim 1 : vector<8x512xf32>, i32 -> vector<8x512xf32>
    %118 = vector.broadcast %23 : vector<1x512xf32> to vector<8x512xf32>
    %119 = arith.mulf %117, %118 : vector<8x512xf32>
    %120 = arith.truncf %119 : vector<8x512xf32> to vector<8x512xbf16>
    %c1_i32_27 = arith.constant 1 : i32
    %121 = tpu.dynamic_rotate %108 by %c1_i32_27 dim 1 : vector<8x512xf32>, i32 -> vector<8x512xf32>
    %122 = vector.broadcast %26 : vector<1x512xf32> to vector<8x512xf32>
    %123 = arith.mulf %121, %122 : vector<8x512xf32>
    %124 = arith.truncf %123 : vector<8x512xf32> to vector<8x512xbf16>
    %125 = arith.truncf %108 : vector<8x512xf32> to vector<8x512xbf16>
    %c511_i32_28 = arith.constant 511 : i32
    %126 = tpu.dynamic_rotate %108 by %c511_i32_28 dim 1 : vector<8x512xf32>, i32 -> vector<8x512xf32>
    %127 = vector.broadcast %29 : vector<1x512xf32> to vector<8x512xf32>
    %128 = arith.mulf %126, %127 : vector<8x512xf32>
    %129 = arith.truncf %128 : vector<8x512xf32> to vector<8x512xbf16>
    %c497_i32_29 = arith.constant 497 : i32
    %130 = tpu.dynamic_rotate %108 by %c497_i32_29 dim 1 : vector<8x512xf32>, i32 -> vector<8x512xf32>
    %131 = vector.broadcast %33 : vector<1x512xf32> to vector<8x512xf32>
    %132 = arith.mulf %130, %131 : vector<8x512xf32>
    %133 = arith.truncf %132 : vector<8x512xf32> to vector<8x512xbf16>
    %c496_i32_30 = arith.constant 496 : i32
    %134 = tpu.dynamic_rotate %108 by %c496_i32_30 dim 1 : vector<8x512xf32>, i32 -> vector<8x512xf32>
    %135 = vector.broadcast %36 : vector<1x512xf32> to vector<8x512xf32>
    %136 = arith.mulf %134, %135 : vector<8x512xf32>
    %137 = arith.truncf %136 : vector<8x512xf32> to vector<8x512xbf16>
    %c495_i32_31 = arith.constant 495 : i32
    %138 = tpu.dynamic_rotate %108 by %c495_i32_31 dim 1 : vector<8x512xf32>, i32 -> vector<8x512xf32>
    %139 = vector.broadcast %40 : vector<1x512xf32> to vector<8x512xf32>
    %140 = arith.mulf %138, %139 : vector<8x512xf32>
    %141 = arith.truncf %140 : vector<8x512xf32> to vector<8x512xbf16>
    %142 = tpu.concatenate %112, %116, %120, %124, %125, %129, %133, %137, %141 in 0 : vector<8x512xbf16>, vector<8x512xbf16>, vector<8x512xbf16>, vector<8x512xbf16>, vector<8x512xbf16>, vector<8x512xbf16>, vector<8x512xbf16>, vector<8x512xbf16>, vector<8x512xbf16> -> vector<72x512xbf16>
    %c0_32 = arith.constant 0 : index
    %c0_33 = arith.constant 0 : index
    %143 = vector.load %arg4[%c0_32, %c0_33] : memref<16x72xbf16, #tpu.memory_space<vmem>>, vector<16x72xbf16>
    %cst_34 = arith.constant dense<0.000000e+00> : vector<16x512xf32>
    %144 = tpu.matmul %143, %142, %cst_34 {dimension_numbers = #tpu.dot_dimension_numbers<[1], [0], [0], [1], [0, 0, 1, 1], [], []>} : vector<16x72xbf16>, vector<72x512xbf16>, vector<16x512xf32> -> vector<16x512xf32>
    %c0_35 = arith.constant 0 : index
    %c0_36 = arith.constant 0 : index
    %145 = vector.load %arg5[%c0_35, %c0_36] : memref<16x1xf32, #tpu.memory_space<vmem>>, vector<16x1xf32>
    %146 = vector.broadcast %145 : vector<16x1xf32> to vector<16x512xf32>
    %147 = arith.addf %144, %146 : vector<16x512xf32>
    %cst_37 = arith.constant 0.000000e+00 : f32
    %148 = vector.broadcast %cst_37 : f32 to vector<16x512xf32>
    %149 = arith.maximumf %147, %148 : vector<16x512xf32>
    %150 = vector.extract_strided_slice %149 {offsets = [0, 0], sizes = [16, 256], strides = [1, 1]} : vector<16x512xf32> to vector<16x256xf32>
    %cst_38 = arith.constant dense<0.000000e+00> : vector<16xf32>
    %151 = vector.multi_reduction <add>, %150, %cst_38 [1] : vector<16x256xf32> to vector<16xf32>
    %152 = vector.shape_cast %151 : vector<16xf32> to vector<16x1xf32>
    %153 = vector.extract_strided_slice %149 {offsets = [0, 256], sizes = [16, 256], strides = [1, 1]} : vector<16x512xf32> to vector<16x256xf32>
    %cst_39 = arith.constant dense<0.000000e+00> : vector<16xf32>
    %154 = vector.multi_reduction <add>, %153, %cst_39 [1] : vector<16x256xf32> to vector<16xf32>
    %155 = vector.shape_cast %154 : vector<16xf32> to vector<16x1xf32>
    %156 = tpu.concatenate %152, %155 in 1 : vector<16x1xf32>, vector<16x1xf32> -> vector<16x2xf32>
    %cst_40 = arith.constant 3.906250e-03 : f32
    %157 = vector.broadcast %cst_40 : f32 to vector<16x2xf32>
    %158 = arith.mulf %156, %157 : vector<16x2xf32>
    %c0_41 = arith.constant 0 : index
    %c0_42 = arith.constant 0 : index
    %159 = vector.load %arg6[%c0_41, %c0_42] : memref<16x2xf32, #tpu.memory_space<vmem>>, vector<16x2xf32>
    tpu.vector_store %arg6[%c0_41, %c0_42], %158 {strides = array<i32>} : memref<16x2xf32, #tpu.memory_space<vmem>>, vector<16x2xf32>,
    return
  }
  func.func @transform_0(%arg0: i32) -> (i32, i32) {
    %c0_i32 = arith.constant 0 : i32
    %c0_i32_0 = arith.constant 0 : i32
    return %c0_i32, %arg0 : i32, i32
  }
  func.func @transform_1(%arg0: i32) -> (i32, i32) {
    %c0_i32 = arith.constant 0 : i32
    %c0_i32_0 = arith.constant 0 : i32
    %c0_i32_1 = arith.constant 0 : i32
    return %c0_i32, %c0_i32_0 : i32, i32
  }
  func.func @transform_2(%arg0: i32) -> (i32, i32) {
    %c0_i32 = arith.constant 0 : i32
    %c0_i32_0 = arith.constant 0 : i32
    %c0_i32_1 = arith.constant 0 : i32
    return %c0_i32, %c0_i32_0 : i32, i32
  }
  func.func @transform_3(%arg0: i32) -> (i32, i32) {
    %c0_i32 = arith.constant 0 : i32
    %c0_i32_0 = arith.constant 0 : i32
    %c0_i32_1 = arith.constant 0 : i32
    return %c0_i32, %c0_i32_0 : i32, i32
  }
  func.func @transform_4(%arg0: i32) -> (i32, i32) {
    %c0_i32 = arith.constant 0 : i32
    %c0_i32_0 = arith.constant 0 : i32
    %c0_i32_1 = arith.constant 0 : i32
    return %c0_i32, %c0_i32_0 : i32, i32
  }
  func.func @transform_5(%arg0: i32) -> (i32, i32) {
    %c0_i32 = arith.constant 0 : i32
    %c0_i32_0 = arith.constant 0 : i32
    return %c0_i32, %arg0 : i32, i32
  }
}

</mosaic_0001>

<llo_original>
// kernel: tpu_custom_call.1
$region0: #{tpu_custom_call.1}
  #allocation0 [shape = 'u32[]', space=smem, size = 0x4, offset = 0x4, fixed_abs, tag = 'smem constant byte address 0x4 - core index']
  #allocation1 [shape = 'u32[72,128]{1,0:T(1,128)}', space=vmem, size = 0x9000, scoped, tag = 'internal scratch']
  %s0 = inlined_call_operand.vmem [shape: f32[1,512], index: 0, kind: input, shape index: {}]
  %s1 = inlined_call_operand.vmem [shape: f32[8,9], index: 1, kind: input, shape index: {}]
  %s2 = inlined_call_operand.vmem [shape: f32[8,1], index: 2, kind: input, shape index: {}]
  %s3 = inlined_call_operand.vmem [shape: bf16[16,72], index: 3, kind: input, shape index: {}]
  %s4 = inlined_call_operand.vmem [shape: f32[16,1], index: 4, kind: input, shape index: {}]
  %s5 = inlined_call_operand.vmem [shape: f32[16,2], index: 5, kind: output, shape index: {}]
  %s6 = sld [smem:[#allocation0]]
  $region30: #{tpu_custom_call.1} parent=0
    _
  %s8 = ssub.s32 1, %s6
  %s9 = scalar_select 0, %s8, %s6
  // Predicated region
  $region2: #{tpu_custom_call.1} parent=0 // pred_check
    _
  $region3: #{tpu_custom_call.1} parent=0 // pred_check_branch
    %11 = sbr.rel (0) target = $region5
  $region4: #{tpu_custom_call.1} parent=0 // pred_region
    _
  $region5: #{tpu_custom_call.1} parent=0 // pred_fallthru
    _
  // Predicated region
  $region6: #{tpu_custom_call.1} parent=0 // pred_check
    _
  $region7: #{tpu_custom_call.1} parent=0 // pred_check_branch
    %13 = sbr.rel (0) target = $region9
  $region8: #{tpu_custom_call.1} parent=0 // pred_region
    _
  $region9: #{tpu_custom_call.1} parent=0 // pred_fallthru
    _
  // Predicated region
  $region10: #{tpu_custom_call.1} parent=0 // pred_check
    _
  $region11: #{tpu_custom_call.1} parent=0 // pred_check_branch
    %15 = sbr.rel (0) target = $region13
  $region12: #{tpu_custom_call.1} parent=0 // pred_region
    _
  $region13: #{tpu_custom_call.1} parent=0 // pred_fallthru
    _
  // Predicated region
  $region14: #{tpu_custom_call.1} parent=0 // pred_check
    _
  $region15: #{tpu_custom_call.1} parent=0 // pred_check_branch
    %17 = sbr.rel (0) target = $region17
  $region16: #{tpu_custom_call.1} parent=0 // pred_region
    _
  $region17: #{tpu_custom_call.1} parent=0 // pred_fallthru
    _
  // Predicated region
  $region18: #{tpu_custom_call.1} parent=0 // pred_check
    _
  $region19: #{tpu_custom_call.1} parent=0 // pred_check_branch
    %19 = sbr.rel (0) target = $region21
  $region20: #{tpu_custom_call.1} parent=0 // pred_region
    _
  $region21: #{tpu_custom_call.1} parent=0 // pred_fallthru
    _
  %v21 = vlaneseq
  %v22 = vand.u32 %v21, 127
  %v23 = vadd.s32 %v22, 128
  %v24 = vadd.s32 %v22, 256
  %v25 = vadd.s32 %v22, 384
  %v26 = vand.u32 %v22, 15
  %v27 = vand.u32 %v23, 15
  %v28 = vand.u32 %v24, 15
  %v29 = vand.u32 %v25, 15
  %v30 = vand.u32 %v22, 255
  %v31 = vand.u32 %v23, 255
  %v32 = vand.u32 %v24, 255
  %v33 = vand.u32 %v25, 255
  %vm34 = vcmp.ge.s32.totalorder %v30, 16
  %vm35 = vcmp.ge.s32.totalorder %v31, 16
  %vm36 = vcmp.ge.s32.totalorder %v32, 16
  %vm37 = vcmp.ge.s32.totalorder %v33, 16
  %vm38 = vcmp.lt.s32.totalorder %v30, 240
  %vm39 = vcmp.lt.s32.totalorder %v31, 240
  %vm40 = vcmp.lt.s32.totalorder %v32, 240
  %vm41 = vcmp.lt.s32.totalorder %v33, 240
  %vm42 = vcmp.ge.s32.totalorder %v26, 1
  %vm43 = vcmp.ge.s32.totalorder %v27, 1
  %vm44 = vcmp.ge.s32.totalorder %v28, 1
  %vm45 = vcmp.ge.s32.totalorder %v29, 1
  %vm46 = vcmp.le.s32.totalorder %v26, 14
  %vm47 = vcmp.le.s32.totalorder %v27, 14
  %vm48 = vcmp.le.s32.totalorder %v28, 14
  %vm49 = vcmp.le.s32.totalorder %v29, 14
  %vm50 = vmand %vm34, %vm42
  %vm51 = vmand %vm35, %vm43
  %vm52 = vmand %vm36, %vm44
  %vm53 = vmand %vm37, %vm45
  %v54 = vsel %vm50, 1.0, 0.0
  %v55 = vsel %vm51, 1.0, 0.0
  %v56 = vsel %vm52, 1.0, 0.0
  %v57 = vsel %vm53, 1.0, 0.0
  %v58 = vsel %vm34, 1.0, 0.0
  %v59 = vsel %vm35, 1.0, 0.0
  %v60 = vsel %vm36, 1.0, 0.0
  %v61 = vsel %vm37, 1.0, 0.0
  %vm62 = vmand %vm34, %vm46
  %vm63 = vmand %vm35, %vm47
  %vm64 = vmand %vm36, %vm48
  %vm65 = vmand %vm37, %vm49
  %v66 = vsel %vm62, 1.0, 0.0
  %v67 = vsel %vm63, 1.0, 0.0
  %v68 = vsel %vm64, 1.0, 0.0
  %v69 = vsel %vm65, 1.0, 0.0
  %v70 = vsel %vm42, 1.0, 0.0
  %v71 = vsel %vm43, 1.0, 0.0
  %v72 = vsel %vm44, 1.0, 0.0
  %v73 = vsel %vm45, 1.0, 0.0
  %v74 = vsel %vm46, 1.0, 0.0
  %v75 = vsel %vm47, 1.0, 0.0
  %v76 = vsel %vm48, 1.0, 0.0
  %v77 = vsel %vm49, 1.0, 0.0
  %vm78 = vmand %vm38, %vm42
  %vm79 = vmand %vm39, %vm43
  %vm80 = vmand %vm40, %vm44
  %vm81 = vmand %vm41, %vm45
  %v82 = vsel %vm78, 1.0, 0.0
  %v83 = vsel %vm79, 1.0, 0.0
  %v84 = vsel %vm80, 1.0, 0.0
  %v85 = vsel %vm81, 1.0, 0.0
  %v86 = vsel %vm38, 1.0, 0.0
  %v87 = vsel %vm39, 1.0, 0.0
  %v88 = vsel %vm40, 1.0, 0.0
  %v89 = vsel %vm41, 1.0, 0.0
  %vm90 = vmand %vm38, %vm46
  %vm91 = vmand %vm39, %vm47
  %vm92 = vmand %vm40, %vm48
  %vm93 = vmand %vm41, %vm49
  %v94 = vsel %vm90, 1.0, 0.0
  %v95 = vsel %vm91, 1.0, 0.0
  %v96 = vsel %vm92, 1.0, 0.0
  %v97 = vsel %vm93, 1.0, 0.0
  %v98 = vld [vmem:[%s0] sm:$0xf]
  %v99 = vld [vmem:[%s1] sm:$0xff]
  %v100 = vld [vmem:[%s2] sm:$0xff]
  %102 = vset.pattern.permute.xlu0 0
  %103 = vperm.xlu0 %102, %v100
  %v104 = vpop.permute.xlu0 %103
  %v107 = vperm.slane %v98, 0
  %v108 = vperm.slane %v98, 1
  %v109 = vperm.slane %v98, 2
  %v110 = vperm.slane %v98, 3
  %115 = vrot.lane.b32.xlu0 %v107, 17
  %v116 = vpop.permute.xlu0 %115
  %117 = vrot.lane.b32.xlu0 %v108, 17
  %v118 = vpop.permute.xlu0 %117
  %119 = vrot.lane.b32.xlu0 %v109, 17
  %v120 = vpop.permute.xlu0 %119
  %121 = vrot.lane.b32.xlu0 %v110, 17
  %v122 = vpop.permute.xlu0 %121
  %vm123 = vcmp.lt.s32.totalorder %v22, 17
  %v124 = vsel %vm123, %v120, %v122
  %v125 = vsel %vm123, %v118, %v120
  %v126 = vsel %vm123, %v116, %v118
  %v127 = vsel %vm123, %v122, %v116
  %v128 = vmul.f32 %v127, %v54
  %v129 = vmul.f32 %v126, %v55
  %v130 = vmul.f32 %v125, %v56
  %v131 = vmul.f32 %v124, %v57
  %133 = vset.pattern.permute.xlu0 0
  %134 = vperm.xlu0 %133, %v99
  %v135 = vpop.permute.xlu0 %134
  %v137 = vperm.slane %v128, 0
  %v138 = vperm.slane %v129, 0
  %v139 = vperm.slane %v130, 0
  %v140 = vperm.slane %v131, 0
  %v141 = vmul.f32 %v135, %v137
  %v142 = vmul.f32 %v135, %v138
  %v143 = vmul.f32 %v135, %v139
  %v144 = vmul.f32 %v135, %v140
  %v145 = vadd.f32 %v104, %v141
  %v146 = vadd.f32 %v104, %v142
  %v147 = vadd.f32 %v104, %v143
  %v148 = vadd.f32 %v104, %v144
  %149 = vrot.lane.b32.xlu0 %v107, 16
  %v150 = vpop.permute.xlu0 %149
  %151 = vrot.lane.b32.xlu0 %v108, 16
  %v152 = vpop.permute.xlu0 %151
  %153 = vrot.lane.b32.xlu0 %v109, 16
  %v154 = vpop.permute.xlu0 %153
  %155 = vrot.lane.b32.xlu0 %v110, 16
  %v156 = vpop.permute.xlu0 %155
  %vm157 = vcmp.lt.s32.totalorder %v22, 16
  %v158 = vsel %vm157, %v154, %v156
  %v159 = vsel %vm157, %v152, %v154
  %v160 = vsel %vm157, %v150, %v152
  %v161 = vsel %vm157, %v156, %v150
  %v162 = vmul.f32 %v161, %v58
  %v163 = vmul.f32 %v160, %v59
  %v164 = vmul.f32 %v159, %v60
  %v165 = vmul.f32 %v158, %v61
  %166 = vset.pattern.permute.xlu0 1
  %167 = vperm.xlu0 %166, %v99
  %v168 = vpop.permute.xlu0 %167
  %v170 = vperm.slane %v162, 0
  %v171 = vperm.slane %v163, 0
  %v172 = vperm.slane %v164, 0
  %v173 = vperm.slane %v165, 0
  %v174 = vmul.f32 %v168, %v170
  %v175 = vmul.f32 %v168, %v171
  %v176 = vmul.f32 %v168, %v172
  %v177 = vmul.f32 %v168, %v173
  %v178 = vadd.f32 %v145, %v174
  %v179 = vadd.f32 %v146, %v175
  %v180 = vadd.f32 %v147, %v176
  %v181 = vadd.f32 %v148, %v177
  %182 = vrot.lane.b32.xlu0 %v107, 15
  %v183 = vpop.permute.xlu0 %182
  %184 = vrot.lane.b32.xlu0 %v108, 15
  %v185 = vpop.permute.xlu0 %184
  %186 = vrot.lane.b32.xlu0 %v109, 15
  %v187 = vpop.permute.xlu0 %186
  %188 = vrot.lane.b32.xlu0 %v110, 15
  %v189 = vpop.permute.xlu0 %188
  %vm190 = vcmp.lt.s32.totalorder %v22, 15
  %v191 = vsel %vm190, %v187, %v189
  %v192 = vsel %vm190, %v185, %v187
  %v193 = vsel %vm190, %v183, %v185
  %v194 = vsel %vm190, %v189, %v183
  %v195 = vmul.f32 %v194, %v66
  %v196 = vmul.f32 %v193, %v67
  %v197 = vmul.f32 %v192, %v68
  %v198 = vmul.f32 %v191, %v69
  %199 = vset.pattern.permute.xlu0 2
  %200 = vperm.xlu0 %199, %v99
  %v201 = vpop.permute.xlu0 %200
  %v203 = vperm.slane %v195, 0
  %v204 = vperm.slane %v196, 0
  %v205 = vperm.slane %v197, 0
  %v206 = vperm.slane %v198, 0
  %v207 = vmul.f32 %v201, %v203
  %v208 = vmul.f32 %v201, %v204
  %v209 = vmul.f32 %v201, %v205
  %v210 = vmul.f32 %v201, %v206
  %v211 = vadd.f32 %v178, %v207
  %v212 = vadd.f32 %v179, %v208
  %v213 = vadd.f32 %v180, %v209
  %v214 = vadd.f32 %v181, %v210
  %215 = vrot.lane.b32.xlu0 %v107, 1
  %v216 = vpop.permute.xlu0 %215
  %217 = vrot.lane.b32.xlu0 %v108, 1
  %v218 = vpop.permute.xlu0 %217
  %219 = vrot.lane.b32.xlu0 %v109, 1
  %v220 = vpop.permute.xlu0 %219
  %221 = vrot.lane.b32.xlu0 %v110, 1
  %v222 = vpop.permute.xlu0 %221
  %vm223 = vcmp.lt.s32.totalorder %v22, 1
  %v224 = vsel %vm223, %v220, %v222
  %v225 = vsel %vm223, %v218, %v220
  %v226 = vsel %vm223, %v216, %v218
  %v227 = vsel %vm223, %v222, %v216
  %v228 = vmul.f32 %v227, %v70
  %v229 = vmul.f32 %v226, %v71
  %v230 = vmul.f32 %v225, %v72
  %v231 = vmul.f32 %v224, %v73
  %232 = vset.pattern.permute.xlu0 3
  %233 = vperm.xlu0 %232, %v99
  %v234 = vpop.permute.xlu0 %233
  %v236 = vperm.slane %v228, 0
  %v237 = vperm.slane %v229, 0
  %v238 = vperm.slane %v230, 0
  %v239 = vperm.slane %v231, 0
  %v240 = vmul.f32 %v234, %v236
  %v241 = vmul.f32 %v234, %v237
  %v242 = vmul.f32 %v234, %v238
  %v243 = vmul.f32 %v234, %v239
  %v244 = vadd.f32 %v211, %v240
  %v245 = vadd.f32 %v212, %v241
  %v246 = vadd.f32 %v213, %v242
  %v247 = vadd.f32 %v214, %v243
  %248 = vset.pattern.permute.xlu0 4
  %249 = vperm.xlu0 %248, %v99
  %v250 = vpop.permute.xlu0 %249
  %v252 = vmul.f32 %v250, %v107
  %v253 = vmul.f32 %v250, %v108
  %v254 = vmul.f32 %v250, %v109
  %v255 = vmul.f32 %v250, %v110
  %v256 = vadd.f32 %v244, %v252
  %v257 = vadd.f32 %v245, %v253
  %v258 = vadd.f32 %v246, %v254
  %v259 = vadd.f32 %v247, %v255
  %260 = vrot.lane.b32.xlu0 %v107, 127
  %v261 = vpop.permute.xlu0 %260
  %262 = vrot.lane.b32.xlu0 %v108, 127
  %v263 = vpop.permute.xlu0 %262
  %264 = vrot.lane.b32.xlu0 %v109, 127
  %v265 = vpop.permute.xlu0 %264
  %266 = vrot.lane.b32.xlu0 %v110, 127
  %v267 = vpop.permute.xlu0 %266
  %vm268 = vcmp.lt.s32.totalorder %v22, 127
  %v269 = vsel %vm268, %v265, %v267
  %v270 = vsel %vm268, %v263, %v265
  %v271 = vsel %vm268, %v261, %v263
  %v272 = vsel %vm268, %v267, %v261
  %v273 = vmul.f32 %v271, %v74
  %v274 = vmul.f32 %v270, %v75
  %v275 = vmul.f32 %v269, %v76
  %v276 = vmul.f32 %v272, %v77
  %277 = vset.pattern.permute.xlu0 5
  %278 = vperm.xlu0 %277, %v99
  %v279 = vpop.permute.xlu0 %278
  %v281 = vperm.slane %v273, 0
  %v282 = vperm.slane %v274, 0
  %v283 = vperm.slane %v275, 0
  %v284 = vperm.slane %v276, 0
  %v285 = vmul.f32 %v279, %v281
  %v286 = vmul.f32 %v279, %v282
  %v287 = vmul.f32 %v279, %v283
  %v288 = vmul.f32 %v279, %v284
  %v289 = vadd.f32 %v256, %v285
  %v290 = vadd.f32 %v257, %v286
  %v291 = vadd.f32 %v258, %v287
  %v292 = vadd.f32 %v259, %v288
  %293 = vrot.lane.b32.xlu0 %v107, 113
  %v294 = vpop.permute.xlu0 %293
  %295 = vrot.lane.b32.xlu0 %v108, 113
  %v296 = vpop.permute.xlu0 %295
  %297 = vrot.lane.b32.xlu0 %v109, 113
  %v298 = vpop.permute.xlu0 %297
  %299 = vrot.lane.b32.xlu0 %v110, 113
  %v300 = vpop.permute.xlu0 %299
  %vm301 = vcmp.lt.s32.totalorder %v22, 113
  %v302 = vsel %vm301, %v298, %v300
  %v303 = vsel %vm301, %v296, %v298
  %v304 = vsel %vm301, %v294, %v296
  %v305 = vsel %vm301, %v300, %v294
  %v306 = vmul.f32 %v304, %v82
  %v307 = vmul.f32 %v303, %v83
  %v308 = vmul.f32 %v302, %v84
  %v309 = vmul.f32 %v305, %v85
  %310 = vset.pattern.permute.xlu0 6
  %311 = vperm.xlu0 %310, %v99
  %v312 = vpop.permute.xlu0 %311
  %v314 = vperm.slane %v306, 0
  %v315 = vperm.slane %v307, 0
  %v316 = vperm.slane %v308, 0
  %v317 = vperm.slane %v309, 0
  %v318 = vmul.f32 %v312, %v314
  %v319 = vmul.f32 %v312, %v315
  %v320 = vmul.f32 %v312, %v316
  %v321 = vmul.f32 %v312, %v317
  %v322 = vadd.f32 %v289, %v318
  %v323 = vadd.f32 %v290, %v319
  %v324 = vadd.f32 %v291, %v320
  %v325 = vadd.f32 %v292, %v321
  %326 = vrot.lane.b32.xlu0 %v107, 112
  %v327 = vpop.permute.xlu0 %326
  %328 = vrot.lane.b32.xlu0 %v108, 112
  %v329 = vpop.permute.xlu0 %328
  %330 = vrot.lane.b32.xlu0 %v109, 112
  %v331 = vpop.permute.xlu0 %330
  %332 = vrot.lane.b32.xlu0 %v110, 112
  %v333 = vpop.permute.xlu0 %332
  %vm334 = vcmp.lt.s32.totalorder %v22, 112
  %v335 = vsel %vm334, %v331, %v333
  %v336 = vsel %vm334, %v329, %v331
  %v337 = vsel %vm334, %v327, %v329
  %v338 = vsel %vm334, %v333, %v327
  %v339 = vmul.f32 %v337, %v86
  %v340 = vmul.f32 %v336, %v87
  %v341 = vmul.f32 %v335, %v88
  %v342 = vmul.f32 %v338, %v89
  %343 = vset.pattern.permute.xlu0 7
  %344 = vperm.xlu0 %343, %v99
  %v345 = vpop.permute.xlu0 %344
  %v347 = vperm.slane %v339, 0
  %v348 = vperm.slane %v340, 0
  %v349 = vperm.slane %v341, 0
  %v350 = vperm.slane %v342, 0
  %v351 = vmul.f32 %v345, %v347
  %v352 = vmul.f32 %v345, %v348
  %v353 = vmul.f32 %v345, %v349
  %v354 = vmul.f32 %v345, %v350
  %v355 = vadd.f32 %v322, %v351
  %v356 = vadd.f32 %v323, %v352
  %v357 = vadd.f32 %v324, %v353
  %v358 = vadd.f32 %v325, %v354
  %359 = vrot.lane.b32.xlu0 %v107, 111
  %v360 = vpop.permute.xlu0 %359
  %361 = vrot.lane.b32.xlu0 %v108, 111
  %v362 = vpop.permute.xlu0 %361
  %363 = vrot.lane.b32.xlu0 %v109, 111
  %v364 = vpop.permute.xlu0 %363
  %365 = vrot.lane.b32.xlu0 %v110, 111
  %v366 = vpop.permute.xlu0 %365
  %vm367 = vcmp.lt.s32.totalorder %v22, 111
  %v368 = vsel %vm367, %v364, %v366
  %v369 = vsel %vm367, %v362, %v364
  %v370 = vsel %vm367, %v360, %v362
  %v371 = vsel %vm367, %v366, %v360
  %v372 = vmul.f32 %v370, %v94
  %v373 = vmul.f32 %v369, %v95
  %v374 = vmul.f32 %v368, %v96
  %v375 = vmul.f32 %v371, %v97
  %376 = vset.pattern.permute.xlu0 8
  %377 = vperm.xlu0 %376, %v99
  %v378 = vpop.permute.xlu0 %377
  %v380 = vperm.slane %v372, 0
  %v381 = vperm.slane %v373, 0
  %v382 = vperm.slane %v374, 0
  %v383 = vperm.slane %v375, 0
  %v384 = vmul.f32 %v378, %v380
  %v385 = vmul.f32 %v378, %v381
  %v386 = vmul.f32 %v378, %v382
  %v387 = vmul.f32 %v378, %v383
  %v388 = vadd.f32 %v355, %v384
  %v389 = vadd.f32 %v356, %v385
  %v390 = vadd.f32 %v357, %v386
  %v391 = vadd.f32 %v358, %v387
  %v392 = vmax.f32 %v388, 0.0
  %v393 = vmax.f32 %v389, 0.0
  %v394 = vmax.f32 %v390, 0.0
  %v395 = vmax.f32 %v391, 0.0
  %396 = vrot.lane.b32.xlu0 %v392, 17
  %v397 = vpop.permute.xlu0 %396
  %398 = vrot.lane.b32.xlu0 %v393, 17
  %v399 = vpop.permute.xlu0 %398
  %400 = vrot.lane.b32.xlu0 %v394, 17
  %v401 = vpop.permute.xlu0 %400
  %402 = vrot.lane.b32.xlu0 %v395, 17
  %v403 = vpop.permute.xlu0 %402
  %v404 = vsel %vm123, %v401, %v403
  %v405 = vsel %vm123, %v399, %v401
  %v406 = vsel %vm123, %v397, %v399
  %v407 = vsel %vm123, %v403, %v397
  %v408 = vmul.f32 %v407, %v54
  %v409 = vmul.f32 %v406, %v55
  %v410 = vmul.f32 %v405, %v56
  %v411 = vmul.f32 %v404, %v57
  %v412 = vpack.c.bf16 %v409, %v408
  %v413 = vpack.c.bf16 %v411, %v410
  %414 = vrot.lane.b32.xlu0 %v392, 16
  %v415 = vpop.permute.xlu0 %414
  %416 = vrot.lane.b32.xlu0 %v393, 16
  %v417 = vpop.permute.xlu0 %416
  %418 = vrot.lane.b32.xlu0 %v394, 16
  %v419 = vpop.permute.xlu0 %418
  %420 = vrot.lane.b32.xlu0 %v395, 16
  %v421 = vpop.permute.xlu0 %420
  %v422 = vsel %vm157, %v419, %v421
  %v423 = vsel %vm157, %v417, %v419
  %v424 = vsel %vm157, %v415, %v417
  %v425 = vsel %vm157, %v421, %v415
  %v426 = vmul.f32 %v425, %v58
  %v427 = vmul.f32 %v424, %v59
  %v428 = vmul.f32 %v423, %v60
  %v429 = vmul.f32 %v422, %v61
  %v430 = vpack.c.bf16 %v427, %v426
  %v431 = vpack.c.bf16 %v429, %v428
  %432 = vrot.lane.b32.xlu0 %v392, 15
  %v433 = vpop.permute.xlu0 %432
  %434 = vrot.lane.b32.xlu0 %v393, 15
  %v435 = vpop.permute.xlu0 %434
  %436 = vrot.lane.b32.xlu0 %v394, 15
  %v437 = vpop.permute.xlu0 %436
  %438 = vrot.lane.b32.xlu0 %v395, 15
  %v439 = vpop.permute.xlu0 %438
  %v440 = vsel %vm190, %v437, %v439
  %v441 = vsel %vm190, %v435, %v437
  %v442 = vsel %vm190, %v433, %v435
  %v443 = vsel %vm190, %v439, %v433
  %v444 = vmul.f32 %v443, %v66
  %v445 = vmul.f32 %v442, %v67
  %v446 = vmul.f32 %v441, %v68
  %v447 = vmul.f32 %v440, %v69
  %v448 = vpack.c.bf16 %v445, %v444
  %v449 = vpack.c.bf16 %v447, %v446
  %450 = vrot.lane.b32.xlu0 %v392, 1
  %v451 = vpop.permute.xlu0 %450
  %452 = vrot.lane.b32.xlu0 %v393, 1
  %v453 = vpop.permute.xlu0 %452
  %454 = vrot.lane.b32.xlu0 %v394, 1
  %v455 = vpop.permute.xlu0 %454
  %456 = vrot.lane.b32.xlu0 %v395, 1
  %v457 = vpop.permute.xlu0 %456
  %v458 = vsel %vm223, %v455, %v457
  %v459 = vsel %vm223, %v453, %v455
  %v460 = vsel %vm223, %v451, %v453
  %v461 = vsel %vm223, %v457, %v451
  %v462 = vmul.f32 %v461, %v70
  %v463 = vmul.f32 %v460, %v71
  %v464 = vmul.f32 %v459, %v72
  %v465 = vmul.f32 %v458, %v73
  %v466 = vpack.c.bf16 %v463, %v462
  %v467 = vpack.c.bf16 %v465, %v464
  %v468 = vpack.c.bf16 %v393, %v392
  %v469 = vpack.c.bf16 %v395, %v394
  %470 = vrot.lane.b32.xlu0 %v392, 127
  %v471 = vpop.permute.xlu0 %470
  %472 = vrot.lane.b32.xlu0 %v393, 127
  %v473 = vpop.permute.xlu0 %472
  %474 = vrot.lane.b32.xlu0 %v394, 127
  %v475 = vpop.permute.xlu0 %474
  %476 = vrot.lane.b32.xlu0 %v395, 127
  %v477 = vpop.permute.xlu0 %476
  %v478 = vsel %vm268, %v475, %v477
  %v479 = vsel %vm268, %v473, %v475
  %v480 = vsel %vm268, %v471, %v473
  %v481 = vsel %vm268, %v477, %v471
  %v482 = vmul.f32 %v480, %v74
  %v483 = vmul.f32 %v479, %v75
  %v484 = vmul.f32 %v478, %v76
  %v485 = vmul.f32 %v481, %v77
  %v486 = vpack.c.bf16 %v483, %v482
  %v487 = vpack.c.bf16 %v485, %v484
  %488 = vrot.lane.b32.xlu0 %v392, 113
  %v489 = vpop.permute.xlu0 %488
  %490 = vrot.lane.b32.xlu0 %v393, 113
  %v491 = vpop.permute.xlu0 %490
  %492 = vrot.lane.b32.xlu0 %v394, 113
  %v493 = vpop.permute.xlu0 %492
  %494 = vrot.lane.b32.xlu0 %v395, 113
  %v495 = vpop.permute.xlu0 %494
  %v496 = vsel %vm301, %v493, %v495
  %v497 = vsel %vm301, %v491, %v493
  %v498 = vsel %vm301, %v489, %v491
  %v499 = vsel %vm301, %v495, %v489
  %v500 = vmul.f32 %v498, %v82
  %v501 = vmul.f32 %v497, %v83
  %v502 = vmul.f32 %v496, %v84
  %v503 = vmul.f32 %v499, %v85
  %v504 = vpack.c.bf16 %v501, %v500
  %v505 = vpack.c.bf16 %v503, %v502
  %506 = vrot.lane.b32.xlu0 %v392, 112
  %v507 = vpop.permute.xlu0 %506
  %508 = vrot.lane.b32.xlu0 %v393, 112
  %v509 = vpop.permute.xlu0 %508
  %510 = vrot.lane.b32.xlu0 %v394, 112
  %v511 = vpop.permute.xlu0 %510
  %512 = vrot.lane.b32.xlu0 %v395, 112
  %v513 = vpop.permute.xlu0 %512
  %v514 = vsel %vm334, %v511, %v513
  %v515 = vsel %vm334, %v509, %v511
  %v516 = vsel %vm334, %v507, %v509
  %v517 = vsel %vm334, %v513, %v507
  %v518 = vmul.f32 %v516, %v86
  %v519 = vmul.f32 %v515, %v87
  %v520 = vmul.f32 %v514, %v88
  %v521 = vmul.f32 %v517, %v89
  %v522 = vpack.c.bf16 %v519, %v518
  %v523 = vpack.c.bf16 %v521, %v520
  %524 = vrot.lane.b32.xlu0 %v392, 111
  %v525 = vpop.permute.xlu0 %524
  %526 = vrot.lane.b32.xlu0 %v393, 111
  %v527 = vpop.permute.xlu0 %526
  %528 = vrot.lane.b32.xlu0 %v394, 111
  %v529 = vpop.permute.xlu0 %528
  %530 = vrot.lane.b32.xlu0 %v395, 111
  %v531 = vpop.permute.xlu0 %530
  %v532 = vsel %vm367, %v529, %v531
  %v533 = vsel %vm367, %v527, %v529
  %v534 = vsel %vm367, %v525, %v527
  %v535 = vsel %vm367, %v531, %v525
  %v536 = vmul.f32 %v534, %v94
  %v537 = vmul.f32 %v533, %v95
  %v538 = vmul.f32 %v532, %v96
  %v539 = vmul.f32 %v535, %v97
  %v540 = vpack.c.bf16 %v537, %v536
  %v541 = vpack.c.bf16 %v539, %v538
  %v544 = vunpack.c.l.b16 %v412
  %v545 = vunpack.c.h.b16 %v412
  %v546 = vunpack.c.l.b16 %v413
  %v547 = vunpack.c.h.b16 %v413
  %v548 = vpack.c.b16 %v544, %v544
  %v549 = vpack.c.b16 %v545, %v545
  %v550 = vpack.c.b16 %v546, %v546
  %v551 = vpack.c.b16 %v547, %v547
  %v554 = vunpack.c.l.b16 %v430
  %v555 = vunpack.c.h.b16 %v430
  %v556 = vunpack.c.l.b16 %v431
  %v557 = vunpack.c.h.b16 %v431
  %v558 = vpack.c.b16 %v554, %v554
  %v559 = vpack.c.b16 %v555, %v555
  %v560 = vpack.c.b16 %v556, %v556
  %v561 = vpack.c.b16 %v557, %v557
  %v564 = vunpack.c.l.b16 %v448
  %v565 = vunpack.c.h.b16 %v448
  %v566 = vunpack.c.l.b16 %v449
  %v567 = vunpack.c.h.b16 %v449
  %v568 = vpack.c.b16 %v564, %v564
  %v569 = vpack.c.b16 %v565, %v565
  %v570 = vpack.c.b16 %v566, %v566
  %v571 = vpack.c.b16 %v567, %v567
  %v574 = vunpack.c.l.b16 %v466
  %v575 = vunpack.c.h.b16 %v466
  %v576 = vunpack.c.l.b16 %v467
  %v577 = vunpack.c.h.b16 %v467
  %v578 = vpack.c.b16 %v574, %v574
  %v579 = vpack.c.b16 %v575, %v575
  %v580 = vpack.c.b16 %v576, %v576
  %v581 = vpack.c.b16 %v577, %v577
  %v584 = vunpack.c.l.b16 %v468
  %v585 = vunpack.c.h.b16 %v468
  %v586 = vunpack.c.l.b16 %v469
  %v587 = vunpack.c.h.b16 %v469
  %v588 = vpack.c.b16 %v584, %v584
  %v589 = vpack.c.b16 %v585, %v585
  %v590 = vpack.c.b16 %v586, %v586
  %v591 = vpack.c.b16 %v587, %v587
  %v594 = vunpack.c.l.b16 %v486
  %v595 = vunpack.c.h.b16 %v486
  %v596 = vunpack.c.l.b16 %v487
  %v597 = vunpack.c.h.b16 %v487
  %v598 = vpack.c.b16 %v594, %v594
  %v599 = vpack.c.b16 %v595, %v595
  %v600 = vpack.c.b16 %v596, %v596
  %v601 = vpack.c.b16 %v597, %v597
  %v604 = vunpack.c.l.b16 %v504
  %v605 = vunpack.c.h.b16 %v504
  %v606 = vunpack.c.l.b16 %v505
  %v607 = vunpack.c.h.b16 %v505
  %v608 = vpack.c.b16 %v604, %v604
  %v609 = vpack.c.b16 %v605, %v605
  %v610 = vpack.c.b16 %v606, %v606
  %v611 = vpack.c.b16 %v607, %v607
  %v614 = vunpack.c.l.b16 %v522
  %v615 = vunpack.c.h.b16 %v522
  %v616 = vunpack.c.l.b16 %v523
  %v617 = vunpack.c.h.b16 %v523
  %v618 = vpack.c.b16 %v614, %v614
  %v619 = vpack.c.b16 %v615, %v615
  %v620 = vpack.c.b16 %v616, %v616
  %v621 = vpack.c.b16 %v617, %v617
  %v624 = vunpack.c.l.b16 %v540
  %v625 = vunpack.c.h.b16 %v540
  %v626 = vunpack.c.l.b16 %v541
  %v627 = vunpack.c.h.b16 %v541
  %v628 = vpack.c.b16 %v624, %v624
  %v629 = vpack.c.b16 %v625, %v625
  %v630 = vpack.c.b16 %v626, %v626
  %v631 = vpack.c.b16 %v627, %v627
  %vm632 = vcmask 1043456
  %v635 = vsel %vm632, %v548, %v558
  %v639 = vsel %vm632, %v549, %v559
  %v643 = vsel %vm632, %v550, %v560
  %v647 = vsel %vm632, %v551, %v561
  %v651 = vsel %vm632, %v568, %v578
  %v655 = vsel %vm632, %v569, %v579
  %v659 = vsel %vm632, %v570, %v580
  %v663 = vsel %vm632, %v571, %v581
  %v667 = vsel %vm632, %v588, %v598
  %v671 = vsel %vm632, %v589, %v599
  %v675 = vsel %vm632, %v590, %v600
  %v679 = vsel %vm632, %v591, %v601
  %v683 = vsel %vm632, %v608, %v618
  %v687 = vsel %vm632, %v609, %v619
  %v691 = vsel %vm632, %v610, %v620
  %v695 = vsel %vm632, %v611, %v621
  %v697 = vld [vmem:[%s3] sm:$0xf]
  %v698 = vld [vmem:[%s3 + $0x4] sm:$0xf]
  %v699 = vld [vmem:[%s4] sm:$0xff]
  %v700 = vld [vmem:[%s4 + $0x8] sm:$0xff]
  %702 = vset.pattern.permute.xlu0 0
  %703 = vperm.xlu0 %702, %v699
  %v704 = vpop.permute.xlu0 %703
  %707 = vset.pattern.permute.xlu0 0
  %708 = vperm.xlu0 %707, %v700
  %v709 = vpop.permute.xlu0 %708
  %v713 = vunpack.c.l.b16 %v697
  %v714 = vunpack.c.l.b16 %v698
  %v715 = vpack.c.b16 %v714, %v713
  %vm716 = vcmask 588800
  %v718 = vsel %vm716, %v715, 0
  %v721 = vsel %vm632, %v628, 0
  %v724 = vsel %vm632, %v629, 0
  %v727 = vsel %vm632, %v630, 0
  %v730 = vsel %vm632, %v631, 0
  %732 = vmatpush.bf16.msra.mxu0 0
  %733 = vmatpush.bf16.msra.mxu0 0
  %734 = vmatpush.bf16.msra.mxu0 0
  %735 = vmatpush.bf16.msra.mxu0 %v721
  %736 = vmatpush.bf16.msra.mxu0 %v683
  %737 = vmatpush.bf16.msra.mxu0 %v667
  %738 = vmatpush.bf16.msra.mxu0 %v651
  %739 = vmatpush.bf16.msra.mxu0 %v635
  %740 = vmatmul.bf16.gmra.mxu0 %v718
  %v741 = vpop.f32.mrf.mxu0
  %v742 = vadd.f32 %v704, %v741
  %v743 = vpop.f32.mrf.mxu0
  %v744 = vadd.f32 %v709, %v743
  %745 = vdwg.mxu0
  %746 = vmatpush.bf16.msra.mxu0 0
  %747 = vmatpush.bf16.msra.mxu0 0
  %748 = vmatpush.bf16.msra.mxu0 0
  %749 = vmatpush.bf16.msra.mxu0 %v724
  %750 = vmatpush.bf16.msra.mxu0 %v687
  %751 = vmatpush.bf16.msra.mxu0 %v671
  %752 = vmatpush.bf16.msra.mxu0 %v655
  %753 = vmatpush.bf16.msra.mxu0 %v639
  %754 = vmatmul.bf16.gmra.mxu0 %v718
  %v755 = vpop.f32.mrf.mxu0
  %v756 = vadd.f32 %v704, %v755
  %v757 = vpop.f32.mrf.mxu0
  %v758 = vadd.f32 %v709, %v757
  %759 = vdwg.mxu0
  %760 = vmatpush.bf16.msra.mxu0 0
  %761 = vmatpush.bf16.msra.mxu0 0
  %762 = vmatpush.bf16.msra.mxu0 0
  %763 = vmatpush.bf16.msra.mxu0 %v727
  %764 = vmatpush.bf16.msra.mxu0 %v691
  %765 = vmatpush.bf16.msra.mxu0 %v675
  %766 = vmatpush.bf16.msra.mxu0 %v659
  %767 = vmatpush.bf16.msra.mxu0 %v643
  %768 = vmatmul.bf16.gmra.mxu0 %v718
  %v769 = vpop.f32.mrf.mxu0
  %v770 = vadd.f32 %v704, %v769
  %v771 = vpop.f32.mrf.mxu0
  %v772 = vadd.f32 %v709, %v771
  %773 = vdwg.mxu0
  %774 = vmatpush.bf16.msra.mxu0 0
  %775 = vmatpush.bf16.msra.mxu0 0
  %776 = vmatpush.bf16.msra.mxu0 0
  %777 = vmatpush.bf16.msra.mxu0 %v730
  %778 = vmatpush.bf16.msra.mxu0 %v695
  %779 = vmatpush.bf16.msra.mxu0 %v679
  %780 = vmatpush.bf16.msra.mxu0 %v663
  %781 = vmatpush.bf16.msra.mxu0 %v647
  %782 = vmatmul.bf16.gmra.mxu0 %v718
  %v783 = vpop.f32.mrf.mxu0
  %v784 = vadd.f32 %v704, %v783
  %v785 = vpop.f32.mrf.mxu0
  %v786 = vadd.f32 %v709, %v785
  %787 = vdwg.mxu0
  %v788 = vmax.f32 %v742, 0.0
  %v789 = vmax.f32 %v756, 0.0
  %v790 = vmax.f32 %v770, 0.0
  %v791 = vmax.f32 %v784, 0.0
  %v792 = vmax.f32 %v744, 0.0
  %v793 = vmax.f32 %v758, 0.0
  %v794 = vmax.f32 %v772, 0.0
  %v795 = vmax.f32 %v786, 0.0
  %v796 = vadd.f32 %v788, %v789
  %797 = vadd.xlane.f32.xlu0 %v796
  %v798 = vpop.xlane.xlu0 %797
  %v799 = vadd.f32 %v792, %v793
  %800 = vadd.xlane.f32.xlu0 %v799
  %v801 = vpop.xlane.xlu0 %800
  %v802 = vadd.f32 %v790, %v791
  %803 = vadd.xlane.f32.xlu0 %v802
  %v804 = vpop.xlane.xlu0 %803
  %v805 = vadd.f32 %v794, %v795
  %806 = vadd.xlane.f32.xlu0 %v805
  %v807 = vpop.xlane.xlu0 %806
  %vm808 = vcmask 7168
  %v809 = vsel %vm808, %v798, %v804
  %v810 = vsel %vm808, %v801, %v807
  %v811 = vmul.f32 %v809, 0.00390625
  %v812 = vmul.f32 %v810, 0.00390625
  %vm813 = vcmask 15360
  %814 = vst.msk [vmem:[%s5] sm:$0xff] %vm813, %v811
  %815 = vst.msk [vmem:[%s5 + $0x8] sm:$0xff] %vm813, %v812
  // Predicated region
  $region22: #{tpu_custom_call.1} parent=0 // pred_check
    _
  $region23: #{tpu_custom_call.1} parent=0 // pred_check_branch
    %817 = sbr.rel (0) target = $region25
  $region24: #{tpu_custom_call.1} parent=0 // pred_region
    _
  $region25: #{tpu_custom_call.1} parent=0 // pred_fallthru
    _
  // Predicated region
  $region26: #{tpu_custom_call.1} parent=0 // pred_check
    _
  $region27: #{tpu_custom_call.1} parent=0 // pred_check_branch
    %819 = sbr.rel (0) target = $region29
  $region28: #{tpu_custom_call.1} parent=0 // pred_region
    _
  $region29: #{tpu_custom_call.1} parent=0 // pred_fallthru
    _

</llo_original>
